<compile_context>
chip_gen: v7x
topology: tpu7x:2x2x1
jax: 0.10.0
libtpu: 0.0.40
codegen_flags: <defaults>
</compile_context>

<pallas_src>
import functools

import jax
import jax.numpy as jnp
from jax.experimental import pallas as pl
from jax.experimental.pallas import tpu as pltpu

_LANE = 128      # vreg lane width
_SUBLANE = 8     # f32 sublane count


def _ema_kernel(mu_ref, x_ref, shadow_ref, out_ref):
    """out = mu * x + (1 - mu) * shadow, elementwise on the VPU."""
    mu = mu_ref[0, 0]
    x = x_ref[...].astype(jnp.float32)
    s = shadow_ref[...].astype(jnp.float32)
    out_ref[...] = (mu * x + (1.0 - mu) * s).astype(out_ref.dtype)


def _device_kind():
    try:
        return jax.devices()[0].device_kind.lower()
    except Exception:  # pragma: no cover - defensive
        return ""


def _default_tiling():
    """Per-chip (tile_rows, vmem_limit_bytes, dimension_semantics)."""
    kind = _device_kind()
    if "v7" in kind:
        # 64 MiB physical VMEM: 4 MiB blocks -> 24 MiB pipelined + headroom.
        return 8192, 40 * 1024 * 1024, ("parallel",)
    if "v5" in kind or "v6" in kind:
        # 128 MiB physical VMEM: 8 MiB blocks -> 48 MiB pipelined.
        return 16384, 56 * 1024 * 1024, ("parallel",)
    if "v2" in kind or "v3" in kind:
        # Small-VMEM chips: 1 MiB blocks, keep the default scoped VMEM limit.
        return 2048, None, ("parallel",)
    # Unknown chip: conservative.
    return 8192, 40 * 1024 * 1024, ("parallel",)


def _ema_pallas_2d(mu_arr, x2, s2, tile_rows, vmem_limit, dims):
    """Run the EMA kernel on lane-dense (rows, 128) slabs."""
    rows = x2.shape[0]
    if rows <= tile_rows:
        tr = rows                                   # full extent: always legal
    else:
        tr = max(_SUBLANE, (tile_rows // _SUBLANE) * _SUBLANE)
    grid = (pl.cdiv(rows, tr),)

    return pl.pallas_call(
        _ema_kernel,
        out_shape=jax.ShapeDtypeStruct((rows, _LANE), x2.dtype),
        grid_spec=pltpu.PrefetchScalarGridSpec(
            num_scalar_prefetch=0,
            grid=grid,
            in_specs=[
                pl.BlockSpec(memory_space=pltpu.MemorySpace.SMEM),   # mu (1,1)
                pl.BlockSpec((tr, _LANE), lambda i: (i, 0)),         # x
                pl.BlockSpec((tr, _LANE), lambda i: (i, 0)),         # shadow
            ],
            out_specs=pl.BlockSpec((tr, _LANE), lambda i: (i, 0)),
        ),
        # The new average IS the new shadow: reuse the shadow HBM buffer.
        input_output_aliases={2: 0},
        compiler_params=pltpu.CompilerParams(
            dimension_semantics=dims,
            vmem_limit_bytes=vmem_limit,
        ),
    )(mu_arr, x2, s2)


def ema_forward(x, shadow, mu, *, tile_rows=None):
    """Compute mu * x + (1 - mu) * shadow with a Pallas TPU kernel.

    Returns the new average (same shape/dtype as x); it is also the new shadow
    value. For a true in-place shadow update the caller MUST donate the shadow
    buffer, e.g. `jax.jit(ema_forward, donate_argnums=(1,))`; otherwise XLA
    inserts a defensive full copy of shadow before the aliased kernel.
    """
    assert x.shape == shadow.shape, "x and shadow must have identical shapes"
    orig_shape = x.shape
    dtype = x.dtype
    n_elem = x.size

    tr_default, vmem_limit, dims = _default_tiling()
    if tile_rows is None:
        tile_rows = tr_default

    # mu lives in SMEM so a single compiled kernel serves every mu value.
    mu_arr = jnp.asarray(mu, dtype=jnp.float32).reshape(1, 1)

    if n_elem % _LANE == 0:
        # Fast path: metadata-only reshape to a lane-dense 2D slab.
        rows = n_elem // _LANE
        out2 = _ema_pallas_2d(mu_arr, x.reshape(rows, _LANE),
                              shadow.reshape(rows, _LANE),
                              tile_rows, vmem_limit, dims)
        return out2.reshape(orig_shape)

    # Rare fallback (element count not a multiple of 128): run the kernel on
    # the lane-aligned prefix and handle the <128-element tail in plain jnp.
    # No full-tensor padding, so no extra full HBM passes.
    x_flat = x.reshape(-1)
    s_flat = shadow.reshape(-1)
    n_main = n_elem - (n_elem % _LANE)
    mu_f = jnp.asarray(mu, dtype=jnp.float32)
    tail = (mu_f * x_flat[n_main:].astype(jnp.float32)
            + (1.0 - mu_f) * s_flat[n_main:].astype(jnp.float32)).astype(dtype)
    if n_main == 0:
        return tail.reshape(orig_shape)
    main = _ema_pallas_2d(mu_arr, x_flat[:n_main].reshape(-1, _LANE),
                          s_flat[:n_main].reshape(-1, _LANE),
                          tile_rows, vmem_limit, dims)
    return jnp.concatenate([main.reshape(-1), tail]).reshape(orig_shape)


def ema_forward_tree(x_tree, shadow_tree, mu, *, tile_rows=None):
    """Batched EMA over a whole parameter pytree.

    Flattens and concatenates all leaves (grouped by dtype) into one lane-dense
    slab per group and issues a single pallas_call per group, amortizing
    per-call dispatch and keeping every DMA at full block size. Returns a
    pytree with the same structure (new averages == new shadows).
    """
    x_leaves, treedef = jax.tree_util.tree_flatten(x_tree)
    s_leaves, s_treedef = jax.tree_util.tree_flatten(shadow_tree)
    assert treedef == s_treedef, "x and shadow pytrees must match"

    tr_default, vmem_limit, dims = _default_tiling()
    if tile_rows is None:
        tile_rows = tr_default
    mu_arr = jnp.asarray(mu, dtype=jnp.float32).reshape(1, 1)

    out_leaves = [None] * len(x_leaves)
    groups = {}
    for idx, (xl, sl) in enumerate(zip(x_leaves, s_leaves)):
        assert xl.shape == sl.shape and xl.dtype == sl.dtype
        groups.setdefault(jnp.dtype(xl.dtype), []).append(idx)

    for dt, idxs in groups.items():
        sizes = [int(x_leaves[i].size) for i in idxs]
        total = sum(sizes)
        pad = (-total) % _LANE
        xs = [x_leaves[i].reshape(-1) for i in idxs]
        ss = [s_leaves[i].reshape(-1) for i in idxs]
        if pad:
            xs.append(jnp.zeros((pad,), dt))
            ss.append(jnp.zeros((pad,), dt))
        x_slab = jnp.concatenate(xs).reshape(-1, _LANE)
        s_slab = jnp.concatenate(ss).reshape(-1, _LANE)
        out_flat = _ema_pallas_2d(mu_arr, x_slab, s_slab,
                                  tile_rows, vmem_limit, dims).reshape(-1)
        off = 0
        for i, n in zip(idxs, sizes):
            out_leaves[i] = out_flat[off:off + n].reshape(x_leaves[i].shape)
            off += n

    return jax.tree_util.tree_unflatten(treedef, out_leaves)


def ema_reference(x, shadow, mu):
    return mu * x + (1.0 - mu) * shadow


if __name__ == "__main__":
    key = jax.random.PRNGKey(0)
    ka, kb, kc, kd, ke, kf, kg, kh = jax.random.split(key, 8)
    mu = 0.999

    # --- Test 1: module-spec shape, jitted, shadow donated (in-place update).
    shape_a = (2, 4, 16, 16)
    xa = jax.random.normal(ka, shape_a, dtype=jnp.float32)
    sa = jax.random.normal(kb, shape_a, dtype=jnp.float32)
    ref_a = ema_reference(xa, sa, mu)          # compute before donating sa

    ema_step = jax.jit(ema_forward, donate_argnums=(1,))
    new_avg_a = jax.block_until_ready(ema_step(xa, sa, mu))
    assert new_avg_a.shape == shape_a and new_avg_a.dtype == xa.dtype
    assert jnp.allclose(new_avg_a, ref_a, atol=1e-6, rtol=1e-6)
    new_shadow_a = new_avg_a   # functional form of `self.shadow[name] = new_average`

    # --- Test 2: multi-block grid with a ragged (masked) last tile.
    shape_b = (4, 8, 32, 32)   # 32768 elems -> 256 rows; 48-row tiles -> 6 blocks
    xb = jax.random.normal(kc, shape_b, dtype=jnp.float32)
    sb = jax.random.normal(kd, shape_b, dtype=jnp.float32)
    ref_b = ema_reference(xb, sb, mu)
    small_tile_step = jax.jit(functools.partial(ema_forward, tile_rows=48),
                              donate_argnums=(1,))
    new_avg_b = jax.block_until_ready(small_tile_step(xb, sb, mu))
    assert jnp.allclose(new_avg_b, ref_b, atol=1e-6, rtol=1e-6)

    # --- Test 3: element counts not divisible by 128 (prefix + jnp tail).
    shape_c = (3, 3, 3, 3)     # 81 elems: pure-tail path
    xc = jax.random.normal(ke, shape_c, dtype=jnp.float32)
    sc = jax.random.normal(kf, shape_c, dtype=jnp.float32)
    ref_c = ema_reference(xc, sc, mu)
    new_avg_c = jax.block_until_ready(ema_forward(xc, sc, mu))
    assert jnp.allclose(new_avg_c, ref_c, atol=1e-6, rtol=1e-6)

    shape_d = (5, 29)          # 145 elems: 128-elem kernel prefix + 17-elem tail
    xd = jax.random.normal(kg, shape_d, dtype=jnp.float32)
    sd = jax.random.normal(kh, shape_d, dtype=jnp.float32)
    ref_d = ema_reference(xd, sd, mu)
    new_avg_d = jax.block_until_ready(ema_forward(xd, sd, mu))
    assert jnp.allclose(new_avg_d, ref_d, atol=1e-6, rtol=1e-6)

    # --- Test 4: batched pytree update (one pallas_call for all params).
    pk = jax.random.split(jax.random.PRNGKey(1), 8)
    params = {"w1": jax.random.normal(pk[0], (8, 32), jnp.float32),
              "b1": jax.random.normal(pk[1], (32,), jnp.float32),
              "w2": jax.random.normal(pk[2], (32, 16), jnp.float32),
              "b2": jax.random.normal(pk[3], (16,), jnp.float32)}
    shadows = {"w1": jax.random.normal(pk[4], (8, 32), jnp.float32),
               "b1": jax.random.normal(pk[5], (32,), jnp.float32),
               "w2": jax.random.normal(pk[6], (32, 16), jnp.float32),
               "b2": jax.random.normal(pk[7], (16,), jnp.float32)}
    ref_tree = jax.tree_util.tree_map(lambda xv, sv: ema_reference(xv, sv, mu),
                                      params, shadows)
    tree_step = jax.jit(ema_forward_tree, donate_argnums=(1,))
    new_tree = jax.block_until_ready(tree_step(params, shadows, mu))
    for name in params:
        assert new_tree[name].shape == params[name].shape
        assert jnp.allclose(new_tree[name], ref_tree[name], atol=1e-6, rtol=1e-6)

    _ = jax.block_until_ready(new_shadow_a)
    print("KERNEL_OK")
</pallas_src>

<mosaic_0001>
module attributes {stable_mosaic.version = 11 : i64} {
  func.func @_ema_kernel(%arg0: i32, %arg1: memref<1x1xf32, #tpu.memory_space<smem>>, %arg2: memref<16x128xf32, #tpu.memory_space<vmem>>, %arg3: memref<16x128xf32, #tpu.memory_space<vmem>>, %arg4: memref<16x128xf32, #tpu.memory_space<vmem>>) attributes {dimension_semantics = [#tpu.dimension_semantics<parallel>], iteration_bounds = array<i64: 1>, scalar_prefetch = 0 : i64, scratch_operands = 0 : i64, tpu.core_type = #tpu.core_type<tc>, window_params = [{transform_indices = @transform_0, window_bounds = array<i64: 1, 1>}, {transform_indices = @transform_1, window_bounds = array<i64: 16, 128>}, {transform_indices = @transform_2, window_bounds = array<i64: 16, 128>}, {transform_indices = @transform_3, window_bounds = array<i64: 16, 128>}]} {
    %c0 = arith.constant 0 : index
    %c0_0 = arith.constant 0 : index
    %0 = memref.load %arg1[%c0, %c0_0] : memref<1x1xf32, #tpu.memory_space<smem>>
    %c0_1 = arith.constant 0 : index
    %c0_2 = arith.constant 0 : index
    %1 = vector.load %arg2[%c0_1, %c0_2] : memref<16x128xf32, #tpu.memory_space<vmem>>, vector<16x128xf32>
    %c0_3 = arith.constant 0 : index
    %c0_4 = arith.constant 0 : index
    %2 = vector.load %arg3[%c0_3, %c0_4] : memref<16x128xf32, #tpu.memory_space<vmem>>, vector<16x128xf32>
    %3 = vector.broadcast %0 : f32 to vector<16x128xf32>
    %4 = arith.mulf %3, %1 : vector<16x128xf32>
    %cst = arith.constant 1.000000e+00 : f32
    %5 = arith.subf %cst, %0 : f32
    %6 = vector.broadcast %5 : f32 to vector<16x128xf32>
    %7 = arith.mulf %6, %2 : vector<16x128xf32>
    %8 = arith.addf %4, %7 : vector<16x128xf32>
    %c0_5 = arith.constant 0 : index
    %c0_6 = arith.constant 0 : index
    %9 = vector.load %arg4[%c0_5, %c0_6] : memref<16x128xf32, #tpu.memory_space<vmem>>, vector<16x128xf32>
    tpu.vector_store %arg4[%c0_5, %c0_6], %8 {strides = array<i32>} : memref<16x128xf32, #tpu.memory_space<vmem>>, vector<16x128xf32>,
    return
  }
  func.func @transform_0(%arg0: i32) -> (i32, i32) {
    %c0_i32 = arith.constant 0 : i32
    %c0_i32_0 = arith.constant 0 : i32
    %c0_i32_1 = arith.constant 0 : i32
    return %c0_i32, %c0_i32_0 : i32, i32
  }
  func.func @transform_1(%arg0: i32) -> (i32, i32) {
    %c0_i32 = arith.constant 0 : i32
    %c0_i32_0 = arith.constant 0 : i32
    return %arg0, %c0_i32 : i32, i32
  }
  func.func @transform_2(%arg0: i32) -> (i32, i32) {
    %c0_i32 = arith.constant 0 : i32
    %c0_i32_0 = arith.constant 0 : i32
    return %arg0, %c0_i32 : i32, i32
  }
  func.func @transform_3(%arg0: i32) -> (i32, i32) {
    %c0_i32 = arith.constant 0 : i32
    %c0_i32_0 = arith.constant 0 : i32
    return %arg0, %c0_i32 : i32, i32
  }
}

</mosaic_0001>

<llo_original>
// kernel: ema_forward.1
$region0: #{ema_forward.1}
  #allocation0 [shape = 'u32[]', space=smem, size = 0x4, offset = 0x4, fixed_abs, tag = 'smem constant byte address 0x4 - core index']
  #allocation1 [shape = 'u32[144,128]{1,0:T(1,128)}', space=vmem, size = 0x12000, scoped, tag = 'internal scratch']
  #allocation2 [shape = 'f32[1,1]{1,0:T(1,128)S(6)}', space=smem, size = 0x200, scoped, tag = 'scoped memory for ema_forward.1']
  %s0 = inlined_call_operand.<no memory space> [shape: f32[1,1], index: 0, kind: input, shape index: {}]
  %s1 = inlined_call_operand.vmem [shape: f32[16,128], index: 1, kind: input, shape index: {}]
  %s2 = inlined_call_operand.vmem [shape: f32[16,128], index: 2, kind: input, shape index: {}, may-alias: {2,3}]
  %s3 = inlined_call_operand.vmem [shape: f32[16,128], index: 3, kind: output, shape index: {}, may-alias: {2,3}]
  %s4 = sld [smem:[#allocation0]]
  $region22: #{ema_forward.1} parent=0
    _
  %s6 = ssub.s32 1, %s4
  %s7 = scalar_select 0, %s6, %s4
  %8 = sst [smem:[#allocation2]] %s0
  // Predicated region
  $region2: #{ema_forward.1} parent=0 // pred_check
    _
  $region3: #{ema_forward.1} parent=0 // pred_check_branch
    %10 = sbr.rel (0) target = $region5
  $region4: #{ema_forward.1} parent=0 // pred_region
    _
  $region5: #{ema_forward.1} parent=0 // pred_fallthru
    _
  // Predicated region
  $region6: #{ema_forward.1} parent=0 // pred_check
    _
  $region7: #{ema_forward.1} parent=0 // pred_check_branch
    %12 = sbr.rel (0) target = $region9
  $region8: #{ema_forward.1} parent=0 // pred_region
    _
  $region9: #{ema_forward.1} parent=0 // pred_fallthru
    _
  // Predicated region
  $region10: #{ema_forward.1} parent=0 // pred_check
    _
  $region11: #{ema_forward.1} parent=0 // pred_check_branch
    %14 = sbr.rel (0) target = $region13
  $region12: #{ema_forward.1} parent=0 // pred_region
    _
  $region13: #{ema_forward.1} parent=0 // pred_fallthru
    _
  %s15 = sld [smem:[#allocation2]]
  %v16 = vld [vmem:[%s1] sm:$0xff]
  %v17 = vld [vmem:[%s1 + $0x8] sm:$0xff]
  %v18 = vld [vmem:[%s2] sm:$0xff]
  %v19 = vld [vmem:[%s2 + $0x8] sm:$0xff]
  %v20 = vstv %s15
  %v21 = vmul.f32 %v20, %v16
  %v22 = vmul.f32 %v20, %v17
  %s23 = ssub.f32 1.0, %s15
  %v24 = vstv %s23
  %v25 = vmul.f32 %v24, %v18
  %v26 = vmul.f32 %v24, %v19
  %v27 = vadd.f32 %v21, %v25
  %v28 = vadd.f32 %v22, %v26
  %29 = vst [vmem:[%s3] sm:$0xff] %v27
  %30 = vst [vmem:[%s3 + $0x8] sm:$0xff] %v28
  // Predicated region
  $region14: #{ema_forward.1} parent=0 // pred_check
    _
  $region15: #{ema_forward.1} parent=0 // pred_check_branch
    %32 = sbr.rel (0) target = $region17
  $region16: #{ema_forward.1} parent=0 // pred_region
    _
  $region17: #{ema_forward.1} parent=0 // pred_fallthru
    _
  // Predicated region
  $region18: #{ema_forward.1} parent=0 // pred_check
    _
  $region19: #{ema_forward.1} parent=0 // pred_check_branch
    %34 = sbr.rel (0) target = $region21
  $region20: #{ema_forward.1} parent=0 // pred_region
    _
  $region21: #{ema_forward.1} parent=0 // pred_fallthru
    _

</llo_original>
